<compile_context>
chip_gen: v5e
topology: v5e:2x2
jax: 0.10.0
libtpu: 0.0.40
codegen_flags: <defaults>
</compile_context>

<pallas_src>
import math
import functools

import jax
import jax.numpy as jnp
from jax import lax
from jax.experimental import pallas as pl
from jax.experimental.pallas import tpu as pltpu


def self_attention_kernel(x_ref, wqkv_ref, bqkv_ref, wo_ref, bo_ref, o_ref,
                          *, heads, head_dim, embed):
    # One grid step == one batch element; all operands for it are resident in VMEM.
    cdt = wqkv_ref.dtype                     # MXU input dtype (bf16 or f32)
    x = x_ref[0]                             # [S, E], already in compute dtype

    # Fused Q|K|V projection: one wide matmul, f32 accumulation, f32 bias add.
    qkv = jnp.dot(x, wqkv_ref[...], preferred_element_type=jnp.float32) + bqkv_ref[0]  # [S, 3E] f32
    qkv_c = qkv.astype(cdt)                  # single downcast for all MXU consumers

    scale = 1.0 / math.sqrt(head_dim)
    seq = x.shape[0]
    out_acc = jnp.zeros((seq, embed), jnp.float32)

    # Static loop over heads (H is small); each head folds directly into the Wo accumulation,
    # so no concatenate and only one head's [S,S] intermediates on the accumulation chain.
    for h in range(heads):
        lo = h * head_dim
        hi = lo + head_dim
        qh = qkv_c[:, lo:hi]                               # [S, D]
        kh = qkv_c[:, embed + lo:embed + hi]               # [S, D]
        vh = qkv_c[:, 2 * embed + lo:2 * embed + hi]       # [S, D]

        # Contract last dims of Q and K directly (no explicit transpose).
        s = lax.dot_general(qh, kh,
                            dimension_numbers=(((1,), (1,)), ((), ())),
                            preferred_element_type=jnp.float32) * scale   # [S, S] f32

        # Numerically-stable softmax, f32 math; reciprocal on the EUP.
        s = s - jnp.max(s, axis=-1, keepdims=True)
        p = jnp.exp(s)
        p = p * pl.reciprocal(jnp.sum(p, axis=-1, keepdims=True), approx=True)

        hv = jnp.dot(p.astype(cdt), vh, preferred_element_type=jnp.float32)          # [S, D]
        out_acc = out_acc + jnp.dot(hv.astype(cdt), wo_ref[lo:hi, :],
                                    preferred_element_type=jnp.float32)              # [S, E]

    o_ref[0] = (out_acc + bo_ref[0]).astype(o_ref.dtype)


def prepare_params(params, compute_dtype=jnp.bfloat16):
    """One-time weight prep (outside the hot path): transpose torch [out,in] -> [in,out],
    fuse Q|K|V weights/biases, cast matmul inputs to the compute dtype, keep biases f32."""
    wq, bq, wk, bk, wv, bv, wo, bo = params
    E = wq.shape[0]
    wqkv = jnp.concatenate([wq.T, wk.T, wv.T], axis=1).astype(compute_dtype)   # [E, 3E]
    bqkv = jnp.concatenate([bq, bk, bv]).reshape(1, 3 * E).astype(jnp.float32)  # [1, 3E]
    wo_t = wo.T.astype(compute_dtype)                                           # [E, E]
    bo2 = bo.reshape(1, E).astype(jnp.float32)                                  # [1, E]
    return wqkv, bqkv, wo_t, bo2


def self_attention(x, prepared, *, heads):
    B, S, E = x.shape
    head_dim = E // heads
    assert head_dim * heads == E

    wqkv, bqkv, wo_t, bo2 = prepared
    compute_dtype = wqkv.dtype
    x_c = x.astype(compute_dtype)

    kernel = functools.partial(self_attention_kernel,
                               heads=heads, head_dim=head_dim, embed=E)

    xspec = pl.BlockSpec((1, S, E), lambda b: (b, 0, 0))
    ospec = pl.BlockSpec((1, S, E), lambda b: (b, 0, 0))
    wqkv_spec = pl.BlockSpec((E, 3 * E), lambda b: (0, 0))
    bqkv_spec = pl.BlockSpec((1, 3 * E), lambda b: (0, 0))
    wo_spec = pl.BlockSpec((E, E), lambda b: (0, 0))
    bo_spec = pl.BlockSpec((1, E), lambda b: (0, 0))

    itemsize = lambda a: a.size * a.dtype.itemsize
    cost = pl.CostEstimate(
        flops=2 * B * S * E * (4 * E + 2 * S),
        transcendentals=B * heads * S * S,
        bytes_accessed=(itemsize(x_c) + B * S * E * x.dtype.itemsize
                        + itemsize(wqkv) + itemsize(bqkv)
                        + itemsize(wo_t) + itemsize(bo2)),
    )

    return pl.pallas_call(
        kernel,
        out_shape=jax.ShapeDtypeStruct((B, S, E), x.dtype),
        grid_spec=pltpu.PrefetchScalarGridSpec(
            num_scalar_prefetch=0,
            grid=(B,),
            in_specs=[xspec, wqkv_spec, bqkv_spec, wo_spec, bo_spec],
            out_specs=ospec,
        ),
        compiler_params=pltpu.CompilerParams(dimension_semantics=("parallel",)),
        cost_estimate=cost,
    )(x_c, wqkv, bqkv, wo_t, bo2)


def _reference(x, params, *, heads):
    # Pure-JAX reference replicating the PyTorch forward exactly (f32).
    B, S, E = x.shape
    D = E // heads
    wq, bq, wk, bk, wv, bv, wo, bo = params
    q = x @ wq.T + bq
    k = x @ wk.T + bk
    v = x @ wv.T + bv
    q = q.reshape(B, S, heads, D).transpose(0, 2, 1, 3)
    k = k.reshape(B, S, heads, D).transpose(0, 2, 1, 3)
    v = v.reshape(B, S, heads, D).transpose(0, 2, 1, 3)
    att = jnp.einsum("bhqd,bhkd->bhqk", q, k) / math.sqrt(D)
    att = jax.nn.softmax(att, axis=-1)
    out = jnp.einsum("bhqk,bhkd->bhqd", att, v)
    out = out.transpose(0, 2, 1, 3).reshape(B, S, E)
    return out @ wo.T + bo


if __name__ == "__main__":
    B, S, E, H = 2, 8, 32, 4

    key = jax.random.PRNGKey(0)
    keys = jax.random.split(key, 9)
    bound = 1.0 / math.sqrt(E)  # nn.Linear default init range
    params = (
        jax.random.uniform(keys[0], (E, E), jnp.float32, -bound, bound),  # Wq
        jax.random.uniform(keys[1], (E,),   jnp.float32, -bound, bound),  # bq
        jax.random.uniform(keys[2], (E, E), jnp.float32, -bound, bound),  # Wk
        jax.random.uniform(keys[3], (E,),   jnp.float32, -bound, bound),  # bk
        jax.random.uniform(keys[4], (E, E), jnp.float32, -bound, bound),  # Wv
        jax.random.uniform(keys[5], (E,),   jnp.float32, -bound, bound),  # bv
        jax.random.uniform(keys[6], (E, E), jnp.float32, -bound, bound),  # Wo
        jax.random.uniform(keys[7], (E,),   jnp.float32, -bound, bound),  # bo
    )
    x = jax.random.normal(keys[8], (B, S, E), jnp.float32)

    ref = _reference(x, params, heads=H)

    # f32 compute path: tight check (only the approx reciprocal perturbs numerics).
    prepared_f32 = prepare_params(params, compute_dtype=jnp.float32)
    out_f32 = jax.block_until_ready(self_attention(x, prepared_f32, heads=H))
    assert jnp.allclose(out_f32, ref, atol=5e-3, rtol=5e-3), "f32 path mismatch vs reference"

    # bf16 MXU-input path (default): looser tolerance for bf16 operands.
    prepared_bf16 = prepare_params(params, compute_dtype=jnp.bfloat16)
    out_bf16 = jax.block_until_ready(self_attention(x, prepared_bf16, heads=H))
    assert jnp.allclose(out_bf16, ref, atol=5e-2, rtol=5e-2), "bf16 path mismatch vs reference"

    print("KERNEL_OK")
</pallas_src>

<mosaic_0001>
module attributes {stable_mosaic.version = 11 : i64} {
  func.func @self_attention_kernel(%arg0: i32, %arg1: memref<1x8x32xf32, #tpu.memory_space<vmem>>, %arg2: memref<32x96xf32, #tpu.memory_space<vmem>>, %arg3: memref<1x96xf32, #tpu.memory_space<vmem>>, %arg4: memref<32x32xf32, #tpu.memory_space<vmem>>, %arg5: memref<1x32xf32, #tpu.memory_space<vmem>>, %arg6: memref<1x8x32xf32, #tpu.memory_space<vmem>>) attributes {dimension_semantics = [#tpu.dimension_semantics<parallel>], iteration_bounds = array<i64: 2>, scalar_prefetch = 0 : i64, scratch_operands = 0 : i64, tpu.core_type = #tpu.core_type<tc>, window_params = [{transform_indices = @transform_0, window_bounds = array<i64: 1, 8, 32>}, {pipeline_mode = #tpu.pipeline_mode<synchronous>, transform_indices = @transform_1, window_bounds = array<i64: 32, 96>}, {pipeline_mode = #tpu.pipeline_mode<synchronous>, transform_indices = @transform_2, window_bounds = array<i64: 1, 96>}, {pipeline_mode = #tpu.pipeline_mode<synchronous>, transform_indices = @transform_3, window_bounds = array<i64: 32, 32>}, {pipeline_mode = #tpu.pipeline_mode<synchronous>, transform_indices = @transform_4, window_bounds = array<i64: 1, 32>}, {transform_indices = @transform_5, window_bounds = array<i64: 1, 8, 32>}]} {
    %c0 = arith.constant 0 : index
    %c0_0 = arith.constant 0 : index
    %c0_1 = arith.constant 0 : index
    %0 = vector.load %arg1[%c0, %c0_0, %c0_1] : memref<1x8x32xf32, #tpu.memory_space<vmem>>, vector<1x8x32xf32>
    %1 = vector.shape_cast %0 : vector<1x8x32xf32> to vector<8x32xf32>
    %c0_2 = arith.constant 0 : index
    %c0_3 = arith.constant 0 : index
    %2 = vector.load %arg2[%c0_2, %c0_3] : memref<32x96xf32, #tpu.memory_space<vmem>>, vector<32x96xf32>
    %cst = arith.constant dense<0.000000e+00> : vector<8x96xf32>
    %3 = tpu.matmul %1, %2, %cst {dimension_numbers = #tpu.dot_dimension_numbers<[1], [0], [0], [1], [0, 0, 1, 1], [], []>} : vector<8x32xf32>, vector<32x96xf32>, vector<8x96xf32> -> vector<8x96xf32>
    %c0_4 = arith.constant 0 : index
    %c0_5 = arith.constant 0 : index
    %4 = vector.load %arg3[%c0_4, %c0_5] : memref<1x96xf32, #tpu.memory_space<vmem>>, vector<1x96xf32>
    %5 = vector.shape_cast %4 : vector<1x96xf32> to vector<96xf32>
    %6 = vector.shape_cast %5 : vector<96xf32> to vector<1x96xf32>
    %7 = vector.broadcast %6 : vector<1x96xf32> to vector<8x96xf32>
    %8 = arith.addf %3, %7 : vector<8x96xf32>
    %cst_6 = arith.constant 0.000000e+00 : f32
    %9 = vector.broadcast %cst_6 : f32 to vector<8x32xf32>
    %10 = vector.extract_strided_slice %8 {offsets = [0, 0], sizes = [8, 8], strides = [1, 1]} : vector<8x96xf32> to vector<8x8xf32>
    %11 = vector.extract_strided_slice %8 {offsets = [0, 32], sizes = [8, 8], strides = [1, 1]} : vector<8x96xf32> to vector<8x8xf32>
    %12 = vector.extract_strided_slice %8 {offsets = [0, 64], sizes = [8, 8], strides = [1, 1]} : vector<8x96xf32> to vector<8x8xf32>
    %cst_7 = arith.constant dense<0.000000e+00> : vector<8x8xf32>
    %13 = tpu.matmul %10, %11, %cst_7 {dimension_numbers = #tpu.dot_dimension_numbers<[1], [1], [0], [0], [0, 0, 1, 0], [], []>} : vector<8x8xf32>, vector<8x8xf32>, vector<8x8xf32> -> vector<8x8xf32>
    %cst_8 = arith.constant 0.353553385 : f32
    %14 = vector.broadcast %cst_8 : f32 to vector<8x8xf32>
    %15 = arith.mulf %13, %14 : vector<8x8xf32>
    %cst_9 = arith.constant dense<0xFF800000> : vector<8xf32>
    %16 = vector.multi_reduction <maximumf>, %15, %cst_9 [1] : vector<8x8xf32> to vector<8xf32>
    %17 = vector.shape_cast %16 : vector<8xf32> to vector<8x1xf32>
    %18 = vector.broadcast %17 : vector<8x1xf32> to vector<8x8xf32>
    %19 = arith.subf %15, %18 : vector<8x8xf32>
    %20 = math.exp %19 : vector<8x8xf32>
    %cst_10 = arith.constant dense<0.000000e+00> : vector<8xf32>
    %21 = vector.multi_reduction <add>, %20, %cst_10 [1] : vector<8x8xf32> to vector<8xf32>
    %22 = vector.shape_cast %21 : vector<8xf32> to vector<8x1xf32>
    %23 = tpu.reciprocal %22 {approx = true} : vector<8x1xf32> -> vector<8x1xf32>
    %24 = vector.broadcast %23 : vector<8x1xf32> to vector<8x8xf32>
    %25 = arith.mulf %20, %24 : vector<8x8xf32>
    %cst_11 = arith.constant dense<0.000000e+00> : vector<8x8xf32>
    %26 = tpu.matmul %25, %12, %cst_11 {dimension_numbers = #tpu.dot_dimension_numbers<[1], [0], [0], [1], [0, 0, 1, 1], [], []>} : vector<8x8xf32>, vector<8x8xf32>, vector<8x8xf32> -> vector<8x8xf32>
    %c0_12 = arith.constant 0 : index
    %c0_13 = arith.constant 0 : index
    %27 = vector.load %arg4[%c0_12, %c0_13] : memref<32x32xf32, #tpu.memory_space<vmem>>, vector<8x32xf32>
    %cst_14 = arith.constant dense<0.000000e+00> : vector<8x32xf32>
    %28 = tpu.matmul %26, %27, %cst_14 {dimension_numbers = #tpu.dot_dimension_numbers<[1], [0], [0], [1], [0, 0, 1, 1], [], []>} : vector<8x8xf32>, vector<8x32xf32>, vector<8x32xf32> -> vector<8x32xf32>
    %29 = arith.addf %9, %28 : vector<8x32xf32>
    %30 = vector.extract_strided_slice %8 {offsets = [0, 8], sizes = [8, 8], strides = [1, 1]} : vector<8x96xf32> to vector<8x8xf32>
    %31 = vector.extract_strided_slice %8 {offsets = [0, 40], sizes = [8, 8], strides = [1, 1]} : vector<8x96xf32> to vector<8x8xf32>
    %32 = vector.extract_strided_slice %8 {offsets = [0, 72], sizes = [8, 8], strides = [1, 1]} : vector<8x96xf32> to vector<8x8xf32>
    %cst_15 = arith.constant dense<0.000000e+00> : vector<8x8xf32>
    %33 = tpu.matmul %30, %31, %cst_15 {dimension_numbers = #tpu.dot_dimension_numbers<[1], [1], [0], [0], [0, 0, 1, 0], [], []>} : vector<8x8xf32>, vector<8x8xf32>, vector<8x8xf32> -> vector<8x8xf32>
    %cst_16 = arith.constant 0.353553385 : f32
    %34 = vector.broadcast %cst_16 : f32 to vector<8x8xf32>
    %35 = arith.mulf %33, %34 : vector<8x8xf32>
    %cst_17 = arith.constant dense<0xFF800000> : vector<8xf32>
    %36 = vector.multi_reduction <maximumf>, %35, %cst_17 [1] : vector<8x8xf32> to vector<8xf32>
    %37 = vector.shape_cast %36 : vector<8xf32> to vector<8x1xf32>
    %38 = vector.broadcast %37 : vector<8x1xf32> to vector<8x8xf32>
    %39 = arith.subf %35, %38 : vector<8x8xf32>
    %40 = math.exp %39 : vector<8x8xf32>
    %cst_18 = arith.constant dense<0.000000e+00> : vector<8xf32>
    %41 = vector.multi_reduction <add>, %40, %cst_18 [1] : vector<8x8xf32> to vector<8xf32>
    %42 = vector.shape_cast %41 : vector<8xf32> to vector<8x1xf32>
    %43 = tpu.reciprocal %42 {approx = true} : vector<8x1xf32> -> vector<8x1xf32>
    %44 = vector.broadcast %43 : vector<8x1xf32> to vector<8x8xf32>
    %45 = arith.mulf %40, %44 : vector<8x8xf32>
    %cst_19 = arith.constant dense<0.000000e+00> : vector<8x8xf32>
    %46 = tpu.matmul %45, %32, %cst_19 {dimension_numbers = #tpu.dot_dimension_numbers<[1], [0], [0], [1], [0, 0, 1, 1], [], []>} : vector<8x8xf32>, vector<8x8xf32>, vector<8x8xf32> -> vector<8x8xf32>
    %c8 = arith.constant 8 : index
    %c0_20 = arith.constant 0 : index
    %47 = vector.load %arg4[%c8, %c0_20] : memref<32x32xf32, #tpu.memory_space<vmem>>, vector<8x32xf32>
    %cst_21 = arith.constant dense<0.000000e+00> : vector<8x32xf32>
    %48 = tpu.matmul %46, %47, %cst_21 {dimension_numbers = #tpu.dot_dimension_numbers<[1], [0], [0], [1], [0, 0, 1, 1], [], []>} : vector<8x8xf32>, vector<8x32xf32>, vector<8x32xf32> -> vector<8x32xf32>
    %49 = arith.addf %29, %48 : vector<8x32xf32>
    %50 = vector.extract_strided_slice %8 {offsets = [0, 16], sizes = [8, 8], strides = [1, 1]} : vector<8x96xf32> to vector<8x8xf32>
    %51 = vector.extract_strided_slice %8 {offsets = [0, 48], sizes = [8, 8], strides = [1, 1]} : vector<8x96xf32> to vector<8x8xf32>
    %52 = vector.extract_strided_slice %8 {offsets = [0, 80], sizes = [8, 8], strides = [1, 1]} : vector<8x96xf32> to vector<8x8xf32>
    %cst_22 = arith.constant dense<0.000000e+00> : vector<8x8xf32>
    %53 = tpu.matmul %50, %51, %cst_22 {dimension_numbers = #tpu.dot_dimension_numbers<[1], [1], [0], [0], [0, 0, 1, 0], [], []>} : vector<8x8xf32>, vector<8x8xf32>, vector<8x8xf32> -> vector<8x8xf32>
    %cst_23 = arith.constant 0.353553385 : f32
    %54 = vector.broadcast %cst_23 : f32 to vector<8x8xf32>
    %55 = arith.mulf %53, %54 : vector<8x8xf32>
    %cst_24 = arith.constant dense<0xFF800000> : vector<8xf32>
    %56 = vector.multi_reduction <maximumf>, %55, %cst_24 [1] : vector<8x8xf32> to vector<8xf32>
    %57 = vector.shape_cast %56 : vector<8xf32> to vector<8x1xf32>
    %58 = vector.broadcast %57 : vector<8x1xf32> to vector<8x8xf32>
    %59 = arith.subf %55, %58 : vector<8x8xf32>
    %60 = math.exp %59 : vector<8x8xf32>
    %cst_25 = arith.constant dense<0.000000e+00> : vector<8xf32>
    %61 = vector.multi_reduction <add>, %60, %cst_25 [1] : vector<8x8xf32> to vector<8xf32>
    %62 = vector.shape_cast %61 : vector<8xf32> to vector<8x1xf32>
    %63 = tpu.reciprocal %62 {approx = true} : vector<8x1xf32> -> vector<8x1xf32>
    %64 = vector.broadcast %63 : vector<8x1xf32> to vector<8x8xf32>
    %65 = arith.mulf %60, %64 : vector<8x8xf32>
    %cst_26 = arith.constant dense<0.000000e+00> : vector<8x8xf32>
    %66 = tpu.matmul %65, %52, %cst_26 {dimension_numbers = #tpu.dot_dimension_numbers<[1], [0], [0], [1], [0, 0, 1, 1], [], []>} : vector<8x8xf32>, vector<8x8xf32>, vector<8x8xf32> -> vector<8x8xf32>
    %c16 = arith.constant 16 : index
    %c0_27 = arith.constant 0 : index
    %67 = vector.load %arg4[%c16, %c0_27] : memref<32x32xf32, #tpu.memory_space<vmem>>, vector<8x32xf32>
    %cst_28 = arith.constant dense<0.000000e+00> : vector<8x32xf32>
    %68 = tpu.matmul %66, %67, %cst_28 {dimension_numbers = #tpu.dot_dimension_numbers<[1], [0], [0], [1], [0, 0, 1, 1], [], []>} : vector<8x8xf32>, vector<8x32xf32>, vector<8x32xf32> -> vector<8x32xf32>
    %69 = arith.addf %49, %68 : vector<8x32xf32>
    %70 = vector.extract_strided_slice %8 {offsets = [0, 24], sizes = [8, 8], strides = [1, 1]} : vector<8x96xf32> to vector<8x8xf32>
    %71 = vector.extract_strided_slice %8 {offsets = [0, 56], sizes = [8, 8], strides = [1, 1]} : vector<8x96xf32> to vector<8x8xf32>
    %72 = vector.extract_strided_slice %8 {offsets = [0, 88], sizes = [8, 8], strides = [1, 1]} : vector<8x96xf32> to vector<8x8xf32>
    %cst_29 = arith.constant dense<0.000000e+00> : vector<8x8xf32>
    %73 = tpu.matmul %70, %71, %cst_29 {dimension_numbers = #tpu.dot_dimension_numbers<[1], [1], [0], [0], [0, 0, 1, 0], [], []>} : vector<8x8xf32>, vector<8x8xf32>, vector<8x8xf32> -> vector<8x8xf32>
    %cst_30 = arith.constant 0.353553385 : f32
    %74 = vector.broadcast %cst_30 : f32 to vector<8x8xf32>
    %75 = arith.mulf %73, %74 : vector<8x8xf32>
    %cst_31 = arith.constant dense<0xFF800000> : vector<8xf32>
    %76 = vector.multi_reduction <maximumf>, %75, %cst_31 [1] : vector<8x8xf32> to vector<8xf32>
    %77 = vector.shape_cast %76 : vector<8xf32> to vector<8x1xf32>
    %78 = vector.broadcast %77 : vector<8x1xf32> to vector<8x8xf32>
    %79 = arith.subf %75, %78 : vector<8x8xf32>
    %80 = math.exp %79 : vector<8x8xf32>
    %cst_32 = arith.constant dense<0.000000e+00> : vector<8xf32>
    %81 = vector.multi_reduction <add>, %80, %cst_32 [1] : vector<8x8xf32> to vector<8xf32>
    %82 = vector.shape_cast %81 : vector<8xf32> to vector<8x1xf32>
    %83 = tpu.reciprocal %82 {approx = true} : vector<8x1xf32> -> vector<8x1xf32>
    %84 = vector.broadcast %83 : vector<8x1xf32> to vector<8x8xf32>
    %85 = arith.mulf %80, %84 : vector<8x8xf32>
    %cst_33 = arith.constant dense<0.000000e+00> : vector<8x8xf32>
    %86 = tpu.matmul %85, %72, %cst_33 {dimension_numbers = #tpu.dot_dimension_numbers<[1], [0], [0], [1], [0, 0, 1, 1], [], []>} : vector<8x8xf32>, vector<8x8xf32>, vector<8x8xf32> -> vector<8x8xf32>
    %c24 = arith.constant 24 : index
    %c0_34 = arith.constant 0 : index
    %87 = vector.load %arg4[%c24, %c0_34] : memref<32x32xf32, #tpu.memory_space<vmem>>, vector<8x32xf32>
    %cst_35 = arith.constant dense<0.000000e+00> : vector<8x32xf32>
    %88 = tpu.matmul %86, %87, %cst_35 {dimension_numbers = #tpu.dot_dimension_numbers<[1], [0], [0], [1], [0, 0, 1, 1], [], []>} : vector<8x8xf32>, vector<8x32xf32>, vector<8x32xf32> -> vector<8x32xf32>
    %89 = arith.addf %69, %88 : vector<8x32xf32>
    %c0_36 = arith.constant 0 : index
    %c0_37 = arith.constant 0 : index
    %90 = vector.load %arg5[%c0_36, %c0_37] : memref<1x32xf32, #tpu.memory_space<vmem>>, vector<1x32xf32>
    %91 = vector.shape_cast %90 : vector<1x32xf32> to vector<32xf32>
    %92 = vector.shape_cast %91 : vector<32xf32> to vector<1x32xf32>
    %93 = vector.broadcast %92 : vector<1x32xf32> to vector<8x32xf32>
    %94 = arith.addf %89, %93 : vector<8x32xf32>
    %c0_38 = arith.constant 0 : index
    %c0_39 = arith.constant 0 : index
    %c0_40 = arith.constant 0 : index
    %95 = vector.load %arg6[%c0_38, %c0_39, %c0_40] : memref<1x8x32xf32, #tpu.memory_space<vmem>>, vector<1x8x32xf32>
    %96 = vector.shape_cast %95 : vector<1x8x32xf32> to vector<8x32xf32>
    %97 = vector.shape_cast %94 : vector<8x32xf32> to vector<1x8x32xf32>
    tpu.vector_store %arg6[%c0_38, %c0_39, %c0_40], %97 {strides = array<i32>} : memref<1x8x32xf32, #tpu.memory_space<vmem>>, vector<1x8x32xf32>,
    return
  }
  func.func @transform_0(%arg0: i32) -> (i32, i32, i32) {
    %c0_i32 = arith.constant 0 : i32
    %c0_i32_0 = arith.constant 0 : i32
    %c0_i32_1 = arith.constant 0 : i32
    return %arg0, %c0_i32, %c0_i32_0 : i32, i32, i32
  }
  func.func @transform_1(%arg0: i32) -> (i32, i32) {
    %c0_i32 = arith.constant 0 : i32
    %c0_i32_0 = arith.constant 0 : i32
    %c0_i32_1 = arith.constant 0 : i32
    return %c0_i32, %c0_i32_0 : i32, i32
  }
  func.func @transform_2(%arg0: i32) -> (i32, i32) {
    %c0_i32 = arith.constant 0 : i32
    %c0_i32_0 = arith.constant 0 : i32
    %c0_i32_1 = arith.constant 0 : i32
    return %c0_i32, %c0_i32_0 : i32, i32
  }
  func.func @transform_3(%arg0: i32) -> (i32, i32) {
    %c0_i32 = arith.constant 0 : i32
    %c0_i32_0 = arith.constant 0 : i32
    %c0_i32_1 = arith.constant 0 : i32
    return %c0_i32, %c0_i32_0 : i32, i32
  }
  func.func @transform_4(%arg0: i32) -> (i32, i32) {
    %c0_i32 = arith.constant 0 : i32
    %c0_i32_0 = arith.constant 0 : i32
    %c0_i32_1 = arith.constant 0 : i32
    return %c0_i32, %c0_i32_0 : i32, i32
  }
  func.func @transform_5(%arg0: i32) -> (i32, i32, i32) {
    %c0_i32 = arith.constant 0 : i32
    %c0_i32_0 = arith.constant 0 : i32
    %c0_i32_1 = arith.constant 0 : i32
    return %arg0, %c0_i32, %c0_i32_0 : i32, i32, i32
  }
}

</mosaic_0001>

<llo_original>
// kernel: tpu_custom_call.1
$region0: #{tpu_custom_call.1}
  #allocation0 [shape = 'u32[]', space=smem, size = 0x4, offset = 0x4, fixed_abs, tag = 'smem constant byte address 0x4 - core index']
  #allocation1 [shape = 'u32[72,128]{1,0:T(1,128)}', space=vmem, size = 0x9000, scoped, tag = 'internal scratch']
  %s0 = inlined_call_operand.hbm [shape: f32[2,8,32], index: 0, kind: input, shape index: {}]
  %s1 = inlined_call_operand.hbm [shape: f32[32,96], index: 1, kind: input, shape index: {}]
  %s2 = inlined_call_operand.vmem [shape: f32[1,96], index: 2, kind: input, shape index: {}]
  %s3 = inlined_call_operand.hbm [shape: f32[32,32], index: 3, kind: input, shape index: {}]
  %s4 = inlined_call_operand.vmem [shape: f32[1,32], index: 4, kind: input, shape index: {}]
  %s5 = inlined_call_operand.hbm [shape: f32[2,8,32], index: 5, kind: output, shape index: {}]
  %s6 = sld [smem:[#allocation0]]
  $region65: #{tpu_custom_call.1} parent=0
    _
  %s8 = ssub.s32 1, %s6
  %s9 = scalar_select 0, %s8, %s6
  $region1: #{tpu_custom_call.1} parent=0
    #allocation2 [shape = 'u8[8192]{0}', space=vmem, size = 0x2000, scoped, tag = 'input window, operand 0']
    #allocation3 [shape = 's32[2]{0}', space=sflag, size = 0x8, scoped, tag = 'scoped memory for tpu_custom_call.1']
    #allocation4 [shape = 's32[2]{0}', space=sflag, size = 0x8, scoped, tag = 'scoped memory for tpu_custom_call.1']
    #allocation5 [shape = 'u8[16384]{0}', space=vmem, size = 0x4000, scoped, tag = 'input window, operand 1, single buffered']
    #allocation6 [shape = 's32[1]{0}', space=sflag, size = 0x4, scoped, tag = 'scoped memory for tpu_custom_call.1']
    #allocation7 [shape = 'u8[16384]{0}', space=vmem, size = 0x4000, scoped, tag = 'input window, operand 3, single buffered']
    #allocation8 [shape = 'u8[8192]{0}', space=vmem, size = 0x2000, scoped, tag = 'output window, operand 0']
    %10 = vsyncpa [#allocation3], 0
    %s11 = scalar_lea.sflag [#allocation3], 1
    %12 = vsyncpa %s11, 0
    %13 = vsyncpa [#allocation6], 0
    %14 = vsyncpa [#allocation4], 0
    %s15 = scalar_lea.sflag [#allocation4], 1
    %16 = vsyncpa %s15, 0
    loop: start=0, step=1, limit=4
    $region2: #{tpu_custom_call.1} parent=1 // loop_pre_header
      _
    $region3: #{tpu_custom_call.1} parent=1 // loop_header
      %s18 = sphi 0, %s22
      %p19 = scmp.ge.s32.totalorder %s18, 4
      %s28 = sphi 0, %s30
      %s31 = sphi 0, %s28
      %s32 = sphi 0, %s31
      %s48 = sphi 0, %s32
      %s52 = sphi 0, %s52
      %s54 = sphi 0, %s52
      %s55 = sphi 0, %s54
      %s69 = sphi 0, %s55
      %s73 = sphi 0, %s73
      %s75 = sphi 0, %s73
      %s76 = sphi 0, %s75
      %s90 = sphi 0, %s76
      %s94 = sphi 0, %s94
      %s96 = sphi 0, %s94
      %s97 = sphi 0, %s96
      %s111 = sphi 0, %s97
      %s115 = sphi 0, %s115
      %s117 = sphi 0, %s115
      %s118 = sphi 0, %s117
      %s132 = sphi 0, %s118
      %s138 = sphi 0, %s140
      %s141 = sphi 0, %s138
      %s142 = sphi 0, %s141
      %s158 = sphi 0, %s142
    $region4: #{tpu_custom_call.1} parent=1 // loop_header_branch
      %21 = sbr.rel (%p19) target = $region8
    $region5: #{tpu_custom_call.1} parent=1 // loop_body
      %s23 = ssub.s32 %s18, 1
      %s24 = ssub.s32 %s18, 2
      %s25 = sadd.s32 %s18, 1
      %s26 = ssub.s32 %s18, %s25
      %p27 = scmp.eq.s32.totalorder %s26, 0
      %s29 = sadd.s32 %s28, 1
      %s30 = scalar_select %p27, %s28, %s29
      %p33 = pneg %p27
      %p34 = scmp.eq.s32.totalorder %s18, 1
      %p35 = por %p33, %p34
      %p36 = scmp.ne.s32.totalorder %s28, %s31
      %p37 = scmp.eq.s32.totalorder %s18, 0
      %p38 = por %p36, %p37
      %p39 = scmp.ne.s32.totalorder %s28, %s31
      %p40 = scmp.eq.s32.totalorder %s23, 1
      %p41 = por %p39, %p40
      %p42 = scmp.ne.s32.totalorder %s31, %s32
      %p43 = scmp.eq.s32.totalorder %s23, 0
      %p44 = por %p42, %p43
      %p45 = scmp.ne.s32.totalorder %s31, %s32
      %p46 = scmp.eq.s32.totalorder %s24, 1
      %p47 = por %p45, %p46
      %p49 = scmp.ne.s32.totalorder %s32, %s48
      %p50 = scmp.eq.s32.totalorder %s24, 0
      %p51 = por %p49, %p50
      %s53 = sadd.s32 %s52, 1
      %p56 = scmp.eq.s32.totalorder %s18, 1
      %p57 = scmp.ne.s32.totalorder %s52, %s54
      %p58 = scmp.eq.s32.totalorder %s18, 0
      %p59 = por %p57, %p58
      %p60 = scmp.ne.s32.totalorder %s52, %s54
      %p61 = scmp.eq.s32.totalorder %s23, 1
      %p62 = por %p60, %p61
      %p63 = scmp.ne.s32.totalorder %s54, %s55
      %p64 = scmp.eq.s32.totalorder %s23, 0
      %p65 = por %p63, %p64
      %p66 = scmp.ne.s32.totalorder %s54, %s55
      %p67 = scmp.eq.s32.totalorder %s24, 1
      %p68 = por %p66, %p67
      %p70 = scmp.ne.s32.totalorder %s55, %s69
      %p71 = scmp.eq.s32.totalorder %s24, 0
      %p72 = por %p70, %p71
      %s74 = sadd.s32 %s73, 1
      %p77 = scmp.eq.s32.totalorder %s18, 1
      %p78 = scmp.ne.s32.totalorder %s73, %s75
      %p79 = scmp.eq.s32.totalorder %s18, 0
      %p80 = por %p78, %p79
      %p81 = scmp.ne.s32.totalorder %s73, %s75
      %p82 = scmp.eq.s32.totalorder %s23, 1
      %p83 = por %p81, %p82
      %p84 = scmp.ne.s32.totalorder %s75, %s76
      %p85 = scmp.eq.s32.totalorder %s23, 0
      %p86 = por %p84, %p85
      %p87 = scmp.ne.s32.totalorder %s75, %s76
      %p88 = scmp.eq.s32.totalorder %s24, 1
      %p89 = por %p87, %p88
      %p91 = scmp.ne.s32.totalorder %s76, %s90
      %p92 = scmp.eq.s32.totalorder %s24, 0
      %p93 = por %p91, %p92
      %s95 = sadd.s32 %s94, 1
      %p98 = scmp.eq.s32.totalorder %s18, 1
      %p99 = scmp.ne.s32.totalorder %s94, %s96
      %p100 = scmp.eq.s32.totalorder %s18, 0
      %p101 = por %p99, %p100
      %p102 = scmp.ne.s32.totalorder %s94, %s96
      %p103 = scmp.eq.s32.totalorder %s23, 1
      %p104 = por %p102, %p103
      %p105 = scmp.ne.s32.totalorder %s96, %s97
      %p106 = scmp.eq.s32.totalorder %s23, 0
      %p107 = por %p105, %p106
      %p108 = scmp.ne.s32.totalorder %s96, %s97
      %p109 = scmp.eq.s32.totalorder %s24, 1
      %p110 = por %p108, %p109
      %p112 = scmp.ne.s32.totalorder %s97, %s111
      %p113 = scmp.eq.s32.totalorder %s24, 0
      %p114 = por %p112, %p113
      %s116 = sadd.s32 %s115, 1
      %p119 = scmp.eq.s32.totalorder %s18, 1
      %p120 = scmp.ne.s32.totalorder %s115, %s117
      %p121 = scmp.eq.s32.totalorder %s18, 0
      %p122 = por %p120, %p121
      %p123 = scmp.ne.s32.totalorder %s115, %s117
      %p124 = scmp.eq.s32.totalorder %s23, 1
      %p125 = por %p123, %p124
      %p126 = scmp.ne.s32.totalorder %s117, %s118
      %p127 = scmp.eq.s32.totalorder %s23, 0
      %p128 = por %p126, %p127
      %p129 = scmp.ne.s32.totalorder %s117, %s118
      %p130 = scmp.eq.s32.totalorder %s24, 1
      %p131 = por %p129, %p130
      %p133 = scmp.ne.s32.totalorder %s118, %s132
      %p134 = scmp.eq.s32.totalorder %s24, 0
      %p135 = por %p133, %p134
      %s136 = ssub.s32 %s18, %s25
      %p137 = scmp.eq.s32.totalorder %s136, 0
      %s139 = sadd.s32 %s138, 1
      %s140 = scalar_select %p137, %s138, %s139
      %p143 = pneg %p137
      %p144 = scmp.eq.s32.totalorder %s18, 1
      %p145 = por %p143, %p144
      %p146 = scmp.ne.s32.totalorder %s138, %s141
      %p147 = scmp.eq.s32.totalorder %s18, 0
      %p148 = por %p146, %p147
      %p149 = scmp.ne.s32.totalorder %s138, %s141
      %p150 = scmp.eq.s32.totalorder %s23, 1
      %p151 = por %p149, %p150
      %p152 = scmp.ne.s32.totalorder %s141, %s142
      %p153 = scmp.eq.s32.totalorder %s23, 0
      %p154 = por %p152, %p153
      %p155 = scmp.ne.s32.totalorder %s141, %s142
      %p156 = scmp.eq.s32.totalorder %s24, 1
      %p157 = por %p155, %p156
      %p159 = scmp.ne.s32.totalorder %s142, %s158
      %p160 = scmp.eq.s32.totalorder %s24, 0
      %p161 = por %p159, %p160
      %p162 = scmp.le.s32.totalorder 1, %s18
      %p163 = scmp.lt.s32.totalorder %s18, 3
      %p164 = pnand %p162, %p163
      %p165 = pneg %p164
      // Predicated region
      $region9: #{tpu_custom_call.1} parent=5 // pred_check
        _
      $region10: #{tpu_custom_call.1} parent=5 // pred_check_branch
        %167 = sbr.rel (%p164) target = $region12
      $region11: #{tpu_custom_call.1} parent=5 // pred_region
        %s168 = ssub.s32 %s18, 1
        // Predicated region
        $region13: #{tpu_custom_call.1} parent=11 // pred_check
          %p169 = pneg %p65
        $region14: #{tpu_custom_call.1} parent=11 // pred_check_branch
          %171 = sbr.rel (%p169) target = $region16
        $region15: #{tpu_custom_call.1} parent=11 // pred_region
          %173 = vsyncadd [#allocation6], 0
          %s174 = sshll.u32 %s1, 4
          %s175 = int_to_ptr.hbm [resolvable:$true] %s174
          %s176 = sshll.u32 [#allocation5], 4
          %s177 = int_to_ptr.vmem [resolvable:$true] %s176
          %182 = dma.hbm_to_vmem [thread:$0]  %s175, 512, %s177, [#allocation6], 128, 128, 8
        $region16: #{tpu_custom_call.1} parent=11 // pred_fallthru
          _
        // Predicated region
        $region17: #{tpu_custom_call.1} parent=11 // pred_check
          %p183 = pneg %p86
        $region18: #{tpu_custom_call.1} parent=11 // pred_check_branch
          %185 = sbr.rel (%p183) target = $region20
        $region19: #{tpu_custom_call.1} parent=11 // pred_region
          _
        $region20: #{tpu_custom_call.1} parent=11 // pred_fallthru
          _
        // Predicated region
        $region21: #{tpu_custom_call.1} parent=11 // pred_check
          %p186 = pneg %p107
        $region22: #{tpu_custom_call.1} parent=11 // pred_check_branch
          %188 = sbr.rel (%p186) target = $region24
        $region23: #{tpu_custom_call.1} parent=11 // pred_region
          %190 = vsyncadd [#allocation6], 0
          %s191 = sshll.u32 %s3, 4
          %s192 = int_to_ptr.hbm [resolvable:$true] %s191
          %s193 = sshll.u32 [#allocation7], 4
          %s194 = int_to_ptr.vmem [resolvable:$true] %s193
          %199 = dma.hbm_to_vmem [thread:$0]  %s192, 512, %s194, [#allocation6], 128, 128, 8
        $region24: #{tpu_custom_call.1} parent=11 // pred_fallthru
          _
        // Predicated region
        $region25: #{tpu_custom_call.1} parent=11 // pred_check
          %p200 = pneg %p128
        $region26: #{tpu_custom_call.1} parent=11 // pred_check_branch
          %202 = sbr.rel (%p200) target = $region28
        $region27: #{tpu_custom_call.1} parent=11 // pred_region
          _
        $region28: #{tpu_custom_call.1} parent=11 // pred_fallthru
          _
      $region12: #{tpu_custom_call.1} parent=5 // pred_fallthru
        _
      %p203 = scmp.lt.s32.totalorder %s18, 2
      // Predicated region
      $region29: #{tpu_custom_call.1} parent=5 // pred_check
        %p204 = pneg %p203
      $region30: #{tpu_custom_call.1} parent=5 // pred_check_branch
        %206 = sbr.rel (%p204) target = $region32
      $region31: #{tpu_custom_call.1} parent=5 // pred_region
        // Predicated region
        $region33: #{tpu_custom_call.1} parent=31 // pred_check
          %p207 = pneg %p38
        $region34: #{tpu_custom_call.1} parent=31 // pred_check_branch
          %209 = sbr.rel (%p207) target = $region36
        $region35: #{tpu_custom_call.1} parent=31 // pred_region
          %s210 = sand.u32 %s28, 1
          %s211 = scalar_lea.sflag [#allocation3], %s210
          %s212 = sand.u32 %s28, 1
          %s213 = smul.addr %s212, 8
          %s214 = scalar_lea.vmem [#allocation2], %s213
          %216 = vsyncadd %s211, 0
          %s217 = smul.addr %s18, 8
          %s218 = scalar_lea.hbm %s0, %s217
          %s220 = sshll.u32 %s218, 4
          %s221 = int_to_ptr.hbm [resolvable:$true] %s220
          %s222 = sshll.u32 %s214, 4
          %s223 = int_to_ptr.vmem [resolvable:$true] %s222
          %225 = dma.hbm_to_vmem [thread:$0]  %s221, 128, %s223, %s211
        $region36: #{tpu_custom_call.1} parent=31 // pred_fallthru
          _
      $region32: #{tpu_custom_call.1} parent=5 // pred_fallthru
        _
      %p226 = scmp.le.s32.totalorder 1, %s18
      %p227 = scmp.lt.s32.totalorder %s18, 3
      %p228 = pnand %p226, %p227
      %p229 = pneg %p228
      // Predicated region
      $region37: #{tpu_custom_call.1} parent=5 // pred_check
        _
      $region38: #{tpu_custom_call.1} parent=5 // pred_check_branch
        %231 = sbr.rel (%p228) target = $region40
      $region39: #{tpu_custom_call.1} parent=5 // pred_region
        %s232 = ssub.s32 %s18, 1
        %s233 = sand.u32 %s31, 1
        %s234 = scalar_lea.sflag [#allocation3], %s233
        %s235 = sand.u32 %s31, 1
        %s236 = smul.addr %s235, 8
        %s237 = scalar_lea.vmem [#allocation2], %s236
        // Predicated region
        $region41: #{tpu_custom_call.1} parent=39 // pred_check
          %p238 = pneg %p44
        $region42: #{tpu_custom_call.1} parent=39 // pred_check_branch
          %240 = sbr.rel (%p238) target = $region44
        $region43: #{tpu_custom_call.1} parent=39 // pred_region
          %242 = dma.done %s234, 128
        $region44: #{tpu_custom_call.1} parent=39 // pred_fallthru
          _
        // Predicated region
        $region45: #{tpu_custom_call.1} parent=39 // pred_check
          %p243 = pneg %p65
        $region46: #{tpu_custom_call.1} parent=39 // pred_check_branch
          %245 = sbr.rel (%p243) target = $region48
        $region47: #{tpu_custom_call.1} parent=39 // pred_region
          %247 = dma.done [#allocation6], 512
        $region48: #{tpu_custom_call.1} parent=39 // pred_fallthru
          _
        // Predicated region
        $region49: #{tpu_custom_call.1} parent=39 // pred_check
          %p248 = pneg %p107
        $region50: #{tpu_custom_call.1} parent=39 // pred_check_branch
          %250 = sbr.rel (%p248) target = $region52
        $region51: #{tpu_custom_call.1} parent=39 // pred_region
          %252 = dma.done [#allocation6], 512
        $region52: #{tpu_custom_call.1} parent=39 // pred_fallthru
          _
        %s253 = sand.u32 %s31, 1
        %s254 = scalar_lea.sflag [#allocation3], %s253
        %s255 = sand.u32 %s31, 1
        %s256 = smul.addr %s255, 8
        %s257 = scalar_lea.vmem [#allocation2], %s256
        %p258 = pneg %p44
        %p259 = pneg %p41
        %p260 = pneg %p65
        %p261 = pneg %p62
        %p262 = pneg %p86
        %p263 = pneg %p83
        %p264 = pneg %p107
        %p265 = pneg %p104
        %p266 = pneg %p128
        %p267 = pneg %p125
        %p268 = pneg %p154
        %p269 = pneg %p151
        %s270 = sand.u32 %s141, 1
        %s271 = scalar_lea.sflag [#allocation4], %s270
        %s272 = sand.u32 %s141, 1
        %s273 = smul.addr %s272, 8
        %s274 = scalar_lea.vmem [#allocation8], %s273
        %v275 = vld [vmem:[%s237] sm:$0xff]
        %v276 = vld [vmem:[#allocation5] sm:$0xff]
        %v277 = vld [vmem:[#allocation5 + $0x8] sm:$0xff]
        %v278 = vld [vmem:[#allocation5 + $0x10] sm:$0xff]
        %v279 = vld [vmem:[#allocation5 + $0x18] sm:$0xff]
        %v280 = vld [vmem:[%s2] sm:$0x1]
        %v282 = vperm.slane %v280, 0
        %vm284 = vcmask 261120
        %v286 = vsel %vm284, %v275, 0
        %288 = vmatpush.msra.mxu0 0.0
        %289 = vmatpush.msra.mxu0 0.0
        %290 = vmatpush.msra.mxu0 0.0
        %291 = vmatpush.msra.mxu0 0.0
        %292 = vmatpush.msra.mxu0 0.0
        %293 = vmatpush.msra.mxu0 0.0
        %294 = vmatpush.msra.mxu0 0.0
        %295 = vmatpush.msra.mxu0 0.0
        %296 = vmatpush.msra.mxu0 0.0
        %297 = vmatpush.msra.mxu0 0.0
        %298 = vmatpush.msra.mxu0 0.0
        %299 = vmatpush.msra.mxu0 0.0
        %300 = vmatpush.msra.mxu0 %v279
        %301 = vmatpush.msra.mxu0 %v278
        %302 = vmatpush.msra.mxu0 %v277
        %303 = vmatpush.msra.mxu0 %v276
        %304 = vmatmul.f32.gmra.mxu0 %v286
        %v305 = vpop.f32.mrf.mxu0
        %v306 = vadd.f32 %v282, %v305
        %307 = vdwg.mxu0
        %309 = vrot.lane.b32.xlu0 %v306, 96
        %v310 = vpop.permute.xlu0 %309
        %vm311 = vcmask 64512
        %v312 = vsel %vm311, %v306, 0
        %v314 = vsel %vm311, %v310, 0
        %316 = vmatpush.xpose.msra.mxu0 0.0
        %317 = vmatpush.xpose.msra.mxu0 0.0
        %318 = vmatpush.xpose.msra.mxu0 0.0
        %319 = vmatpush.xpose.msra.mxu0 0.0
        %320 = vmatpush.xpose.msra.mxu0 0.0
        %321 = vmatpush.xpose.msra.mxu0 0.0
        %322 = vmatpush.xpose.msra.mxu0 0.0
        %323 = vmatpush.xpose.msra.mxu0 0.0
        %324 = vmatpush.xpose.msra.mxu0 0.0
        %325 = vmatpush.xpose.msra.mxu0 0.0
        %326 = vmatpush.xpose.msra.mxu0 0.0
        %327 = vmatpush.xpose.msra.mxu0 0.0
        %328 = vmatpush.xpose.msra.mxu0 0.0
        %329 = vmatpush.xpose.msra.mxu0 0.0
        %330 = vmatpush.xpose.msra.mxu0 0.0
        %331 = vmatpush.xpose.msra.mxu0 %v314
        %332 = vmatmul.f32.gmra.mxu0 %v312
        %v333 = vpop.f32.mrf.mxu0
        %v334 = vadd.f32 0.0, %v333
        %335 = vdwg.mxu0
        %v336 = vmul.f32 %v334, 0.35355338
        %v337 = vsel %vm311, %v336, -inf
        %338 = vmax.xlane.f32.xlu0 %v337
        %v339 = vpop.xlane.xlu0 %338
        %v340 = vsub.f32 %v336, %v339
        %v341 = vmul.f32 %v340, 1.442695
        %v342 = vpow.pop %v341
        %v343 = vsel %vm311, %v342, 0.0
        %344 = vadd.xlane.f32.xlu0 %v343
        %v345 = vpop.xlane.xlu0 %344
        %v346 = vrcp.pop %v345
        %v347 = vmul.f32 %v342, %v346
        %348 = vrot.lane.b32.xlu0 %v306, 64
        %v349 = vpop.permute.xlu0 %348
        %v352 = vsel %vm311, %v347, 0
        %354 = vmatpush.msra.mxu0 0.0
        %355 = vmatpush.msra.mxu0 0.0
        %356 = vmatpush.msra.mxu0 0.0
        %357 = vmatpush.msra.mxu0 0.0
        %358 = vmatpush.msra.mxu0 0.0
        %359 = vmatpush.msra.mxu0 0.0
        %360 = vmatpush.msra.mxu0 0.0
        %361 = vmatpush.msra.mxu0 0.0
        %362 = vmatpush.msra.mxu0 0.0
        %363 = vmatpush.msra.mxu0 0.0
        %364 = vmatpush.msra.mxu0 0.0
        %365 = vmatpush.msra.mxu0 0.0
        %366 = vmatpush.msra.mxu0 0.0
        %367 = vmatpush.msra.mxu0 0.0
        %368 = vmatpush.msra.mxu0 0.0
        %369 = vmatpush.msra.mxu0 %v349
        %370 = vmatmul.f32.gmra.mxu0 %v352
        %v371 = vpop.f32.mrf.mxu0
        %v372 = vadd.f32 0.0, %v371
        %373 = vdwg.mxu0
        %v374 = vld [vmem:[#allocation7] sm:$0xff]
        %375 = vrot.lane.b32.xlu0 %v306, 120
        %v376 = vpop.permute.xlu0 %375
        %377 = vrot.lane.b32.xlu0 %v306, 88
        %v378 = vpop.permute.xlu0 %377
        %v379 = vsel %vm311, %v376, 0
        %v381 = vsel %vm311, %v378, 0
        %383 = vmatpush.xpose.msra.mxu0 0.0
        %384 = vmatpush.xpose.msra.mxu0 0.0
        %385 = vmatpush.xpose.msra.mxu0 0.0
        %386 = vmatpush.xpose.msra.mxu0 0.0
        %387 = vmatpush.xpose.msra.mxu0 0.0
        %388 = vmatpush.xpose.msra.mxu0 0.0
        %389 = vmatpush.xpose.msra.mxu0 0.0
        %390 = vmatpush.xpose.msra.mxu0 0.0
        %391 = vmatpush.xpose.msra.mxu0 0.0
        %392 = vmatpush.xpose.msra.mxu0 0.0
        %393 = vmatpush.xpose.msra.mxu0 0.0
        %394 = vmatpush.xpose.msra.mxu0 0.0
        %395 = vmatpush.xpose.msra.mxu0 0.0
        %396 = vmatpush.xpose.msra.mxu0 0.0
        %397 = vmatpush.xpose.msra.mxu0 0.0
        %398 = vmatpush.xpose.msra.mxu0 %v381
        %399 = vmatmul.f32.gmra.mxu0 %v379
        %v400 = vpop.f32.mrf.mxu0
        %v401 = vadd.f32 0.0, %v400
        %402 = vdwg.mxu0
        %v403 = vmul.f32 %v401, 0.35355338
        %v404 = vsel %vm311, %v403, -inf
        %405 = vmax.xlane.f32.xlu0 %v404
        %v406 = vpop.xlane.xlu0 %405
        %v407 = vsub.f32 %v403, %v406
        %v408 = vmul.f32 %v407, 1.442695
        %v409 = vpow.pop %v408
        %v410 = vsel %vm311, %v409, 0.0
        %411 = vadd.xlane.f32.xlu0 %v410
        %v412 = vpop.xlane.xlu0 %411
        %v413 = vrcp.pop %v412
        %v414 = vmul.f32 %v409, %v413
        %415 = vrot.lane.b32.xlu0 %v306, 56
        %v416 = vpop.permute.xlu0 %415
        %v419 = vsel %vm311, %v414, 0
        %421 = vmatpush.msra.mxu0 0.0
        %422 = vmatpush.msra.mxu0 0.0
        %423 = vmatpush.msra.mxu0 0.0
        %424 = vmatpush.msra.mxu0 0.0
        %425 = vmatpush.msra.mxu0 0.0
        %426 = vmatpush.msra.mxu0 0.0
        %427 = vmatpush.msra.mxu0 0.0
        %428 = vmatpush.msra.mxu0 0.0
        %429 = vmatpush.msra.mxu0 0.0
        %430 = vmatpush.msra.mxu0 0.0
        %431 = vmatpush.msra.mxu0 0.0
        %432 = vmatpush.msra.mxu0 0.0
        %433 = vmatpush.msra.mxu0 0.0
        %434 = vmatpush.msra.mxu0 0.0
        %435 = vmatpush.msra.mxu0 0.0
        %436 = vmatpush.msra.mxu0 %v416
        %437 = vmatmul.f32.gmra.mxu0 %v419
        %v438 = vpop.f32.mrf.mxu0
        %v439 = vadd.f32 0.0, %v438
        %440 = vdwg.mxu0
        %v441 = vld [vmem:[#allocation7 + $0x8] sm:$0xff]
        %v443 = vsel %vm311, %v439, 0
        %445 = vmatpush.msra.mxu0 0.0
        %446 = vmatpush.msra.mxu0 0.0
        %447 = vmatpush.msra.mxu0 0.0
        %448 = vmatpush.msra.mxu0 0.0
        %449 = vmatpush.msra.mxu0 0.0
        %450 = vmatpush.msra.mxu0 0.0
        %451 = vmatpush.msra.mxu0 0.0
        %452 = vmatpush.msra.mxu0 0.0
        %453 = vmatpush.msra.mxu0 0.0
        %454 = vmatpush.msra.mxu0 0.0
        %455 = vmatpush.msra.mxu0 0.0
        %456 = vmatpush.msra.mxu0 0.0
        %457 = vmatpush.msra.mxu0 0.0
        %458 = vmatpush.msra.mxu0 0.0
        %459 = vmatpush.msra.mxu0 0.0
        %460 = vmatpush.msra.mxu0 %v441
        %461 = vmatmul.f32.gmra.mxu0 %v443
        %v462 = vpop.f32.mrf.mxu0
        %v463 = vadd.f32 0.0, %v462
        %464 = vdwg.mxu0
        %v466 = vsel %vm311, %v372, 0
        %468 = vmatpush.msra.mxu0 0.0
        %469 = vmatpush.msra.mxu0 0.0
        %470 = vmatpush.msra.mxu0 0.0
        %471 = vmatpush.msra.mxu0 0.0
        %472 = vmatpush.msra.mxu0 0.0
        %473 = vmatpush.msra.mxu0 0.0
        %474 = vmatpush.msra.mxu0 0.0
        %475 = vmatpush.msra.mxu0 0.0
        %476 = vmatpush.msra.mxu0 0.0
        %477 = vmatpush.msra.mxu0 0.0
        %478 = vmatpush.msra.mxu0 0.0
        %479 = vmatpush.msra.mxu0 0.0
        %480 = vmatpush.msra.mxu0 0.0
        %481 = vmatpush.msra.mxu0 0.0
        %482 = vmatpush.msra.mxu0 0.0
        %483 = vmatpush.msra.mxu0 %v374
        %484 = vmatmul.f32.gmra.mxu0 %v466
        %v485 = vpop.f32.mrf.mxu0
        %v486 = vadd.f32 %v463, %v485
        %487 = vdwg.mxu0
        %488 = vrot.lane.b32.xlu0 %v306, 112
        %v489 = vpop.permute.xlu0 %488
        %490 = vrot.lane.b32.xlu0 %v306, 80
        %v491 = vpop.permute.xlu0 %490
        %v492 = vsel %vm311, %v489, 0
        %v494 = vsel %vm311, %v491, 0
        %496 = vmatpush.xpose.msra.mxu0 0.0
        %497 = vmatpush.xpose.msra.mxu0 0.0
        %498 = vmatpush.xpose.msra.mxu0 0.0
        %499 = vmatpush.xpose.msra.mxu0 0.0
        %500 = vmatpush.xpose.msra.mxu0 0.0
        %501 = vmatpush.xpose.msra.mxu0 0.0
        %502 = vmatpush.xpose.msra.mxu0 0.0
        %503 = vmatpush.xpose.msra.mxu0 0.0
        %504 = vmatpush.xpose.msra.mxu0 0.0
        %505 = vmatpush.xpose.msra.mxu0 0.0
        %506 = vmatpush.xpose.msra.mxu0 0.0
        %507 = vmatpush.xpose.msra.mxu0 0.0
        %508 = vmatpush.xpose.msra.mxu0 0.0
        %509 = vmatpush.xpose.msra.mxu0 0.0
        %510 = vmatpush.xpose.msra.mxu0 0.0
        %511 = vmatpush.xpose.msra.mxu0 %v494
        %512 = vmatmul.f32.gmra.mxu0 %v492
        %v513 = vpop.f32.mrf.mxu0
        %v514 = vadd.f32 0.0, %v513
        %515 = vdwg.mxu0
        %v516 = vmul.f32 %v514, 0.35355338
        %v517 = vsel %vm311, %v516, -inf
        %518 = vmax.xlane.f32.xlu0 %v517
        %v519 = vpop.xlane.xlu0 %518
        %v520 = vsub.f32 %v516, %v519
        %v521 = vmul.f32 %v520, 1.442695
        %v522 = vpow.pop %v521
        %v523 = vsel %vm311, %v522, 0.0
        %524 = vadd.xlane.f32.xlu0 %v523
        %v525 = vpop.xlane.xlu0 %524
        %v526 = vrcp.pop %v525
        %v527 = vmul.f32 %v522, %v526
        %528 = vrot.lane.b32.xlu0 %v306, 48
        %v529 = vpop.permute.xlu0 %528
        %v532 = vsel %vm311, %v527, 0
        %534 = vmatpush.msra.mxu0 0.0
        %535 = vmatpush.msra.mxu0 0.0
        %536 = vmatpush.msra.mxu0 0.0
        %537 = vmatpush.msra.mxu0 0.0
        %538 = vmatpush.msra.mxu0 0.0
        %539 = vmatpush.msra.mxu0 0.0
        %540 = vmatpush.msra.mxu0 0.0
        %541 = vmatpush.msra.mxu0 0.0
        %542 = vmatpush.msra.mxu0 0.0
        %543 = vmatpush.msra.mxu0 0.0
        %544 = vmatpush.msra.mxu0 0.0
        %545 = vmatpush.msra.mxu0 0.0
        %546 = vmatpush.msra.mxu0 0.0
        %547 = vmatpush.msra.mxu0 0.0
        %548 = vmatpush.msra.mxu0 0.0
        %549 = vmatpush.msra.mxu0 %v529
        %550 = vmatmul.f32.gmra.mxu0 %v532
        %v551 = vpop.f32.mrf.mxu0
        %v552 = vadd.f32 0.0, %v551
        %553 = vdwg.mxu0
        %v554 = vld [vmem:[#allocation7 + $0x10] sm:$0xff]
        %v556 = vsel %vm311, %v552, 0
        %558 = vmatpush.msra.mxu0 0.0
        %559 = vmatpush.msra.mxu0 0.0
        %560 = vmatpush.msra.mxu0 0.0
        %561 = vmatpush.msra.mxu0 0.0
        %562 = vmatpush.msra.mxu0 0.0
        %563 = vmatpush.msra.mxu0 0.0
        %564 = vmatpush.msra.mxu0 0.0
        %565 = vmatpush.msra.mxu0 0.0
        %566 = vmatpush.msra.mxu0 0.0
        %567 = vmatpush.msra.mxu0 0.0
        %568 = vmatpush.msra.mxu0 0.0
        %569 = vmatpush.msra.mxu0 0.0
        %570 = vmatpush.msra.mxu0 0.0
        %571 = vmatpush.msra.mxu0 0.0
        %572 = vmatpush.msra.mxu0 0.0
        %573 = vmatpush.msra.mxu0 %v554
        %574 = vmatmul.f32.gmra.mxu0 %v556
        %v575 = vpop.f32.mrf.mxu0
        %v576 = vadd.f32 0.0, %v575
        %577 = vdwg.mxu0
        %v578 = vadd.f32 %v486, %v576
        %579 = vrot.lane.b32.xlu0 %v306, 104
        %v580 = vpop.permute.xlu0 %579
        %581 = vrot.lane.b32.xlu0 %v306, 72
        %v582 = vpop.permute.xlu0 %581
        %v583 = vsel %vm311, %v580, 0
        %v585 = vsel %vm311, %v582, 0
        %587 = vmatpush.xpose.msra.mxu0 0.0
        %588 = vmatpush.xpose.msra.mxu0 0.0
        %589 = vmatpush.xpose.msra.mxu0 0.0
        %590 = vmatpush.xpose.msra.mxu0 0.0
        %591 = vmatpush.xpose.msra.mxu0 0.0
        %592 = vmatpush.xpose.msra.mxu0 0.0
        %593 = vmatpush.xpose.msra.mxu0 0.0
        %594 = vmatpush.xpose.msra.mxu0 0.0
        %595 = vmatpush.xpose.msra.mxu0 0.0
        %596 = vmatpush.xpose.msra.mxu0 0.0
        %597 = vmatpush.xpose.msra.mxu0 0.0
        %598 = vmatpush.xpose.msra.mxu0 0.0
        %599 = vmatpush.xpose.msra.mxu0 0.0
        %600 = vmatpush.xpose.msra.mxu0 0.0
        %601 = vmatpush.xpose.msra.mxu0 0.0
        %602 = vmatpush.xpose.msra.mxu0 %v585
        %603 = vmatmul.f32.gmra.mxu0 %v583
        %v604 = vpop.f32.mrf.mxu0
        %v605 = vadd.f32 0.0, %v604
        %606 = vdwg.mxu0
        %v607 = vmul.f32 %v605, 0.35355338
        %v608 = vsel %vm311, %v607, -inf
        %609 = vmax.xlane.f32.xlu0 %v608
        %v610 = vpop.xlane.xlu0 %609
        %v611 = vsub.f32 %v607, %v610
        %v612 = vmul.f32 %v611, 1.442695
        %v613 = vpow.pop %v612
        %v614 = vsel %vm311, %v613, 0.0
        %615 = vadd.xlane.f32.xlu0 %v614
        %v616 = vpop.xlane.xlu0 %615
        %v617 = vrcp.pop %v616
        %v618 = vmul.f32 %v613, %v617
        %619 = vrot.lane.b32.xlu0 %v306, 40
        %v620 = vpop.permute.xlu0 %619
        %v623 = vsel %vm311, %v618, 0
        %625 = vmatpush.msra.mxu0 0.0
        %626 = vmatpush.msra.mxu0 0.0
        %627 = vmatpush.msra.mxu0 0.0
        %628 = vmatpush.msra.mxu0 0.0
        %629 = vmatpush.msra.mxu0 0.0
        %630 = vmatpush.msra.mxu0 0.0
        %631 = vmatpush.msra.mxu0 0.0
        %632 = vmatpush.msra.mxu0 0.0
        %633 = vmatpush.msra.mxu0 0.0
        %634 = vmatpush.msra.mxu0 0.0
        %635 = vmatpush.msra.mxu0 0.0
        %636 = vmatpush.msra.mxu0 0.0
        %637 = vmatpush.msra.mxu0 0.0
        %638 = vmatpush.msra.mxu0 0.0
        %639 = vmatpush.msra.mxu0 0.0
        %640 = vmatpush.msra.mxu0 %v620
        %641 = vmatmul.f32.gmra.mxu0 %v623
        %v642 = vpop.f32.mrf.mxu0
        %v643 = vadd.f32 0.0, %v642
        %644 = vdwg.mxu0
        %v645 = vld [vmem:[#allocation7 + $0x18] sm:$0xff]
        %v647 = vsel %vm311, %v643, 0
        %649 = vmatpush.msra.mxu0 0.0
        %650 = vmatpush.msra.mxu0 0.0
        %651 = vmatpush.msra.mxu0 0.0
        %652 = vmatpush.msra.mxu0 0.0
        %653 = vmatpush.msra.mxu0 0.0
        %654 = vmatpush.msra.mxu0 0.0
        %655 = vmatpush.msra.mxu0 0.0
        %656 = vmatpush.msra.mxu0 0.0
        %657 = vmatpush.msra.mxu0 0.0
        %658 = vmatpush.msra.mxu0 0.0
        %659 = vmatpush.msra.mxu0 0.0
        %660 = vmatpush.msra.mxu0 0.0
        %661 = vmatpush.msra.mxu0 0.0
        %662 = vmatpush.msra.mxu0 0.0
        %663 = vmatpush.msra.mxu0 0.0
        %664 = vmatpush.msra.mxu0 %v645
        %665 = vmatmul.f32.gmra.mxu0 %v647
        %v666 = vpop.f32.mrf.mxu0
        %v667 = vadd.f32 0.0, %v666
        %668 = vdwg.mxu0
        %v669 = vadd.f32 %v578, %v667
        %v670 = vld [vmem:[%s4] sm:$0x1]
        %v672 = vperm.slane %v670, 0
        %v674 = vadd.f32 %v669, %v672
        %675 = vst.msk [vmem:[%s274] sm:$0xff] %vm284, %v674
        %s676 = sand.u32 %s141, 1
        %s677 = scalar_lea.sflag [#allocation4], %s676
        %s678 = sand.u32 %s141, 1
        %s679 = smul.addr %s678, 8
        %s680 = scalar_lea.vmem [#allocation8], %s679
        // Predicated region
        $region53: #{tpu_custom_call.1} parent=39 // pred_check
          %p681 = pneg %p151
        $region54: #{tpu_custom_call.1} parent=39 // pred_check_branch
          %683 = sbr.rel (%p681) target = $region56
        $region55: #{tpu_custom_call.1} parent=39 // pred_region
          %685 = vsyncadd %s677, 0
          %s686 = smul.addr %s23, 8
          %s687 = scalar_lea.hbm %s5, %s686
          %s689 = sshll.u32 %s680, 4
          %s690 = int_to_ptr.vmem [resolvable:$true] %s689
          %s691 = sshll.u32 %s687, 4
          %s692 = int_to_ptr.hbm [resolvable:$true] %s691
          %694 = dma.vmem_to_hbm [thread:$0]  %s690, 128, %s692, %s677
        $region56: #{tpu_custom_call.1} parent=39 // pred_fallthru
          _
      $region40: #{tpu_custom_call.1} parent=5 // pred_fallthru
        _
      %p695 = scmp.le.s32.totalorder 2, %s18
      // Predicated region
      $region57: #{tpu_custom_call.1} parent=5 // pred_check
        %p696 = pneg %p695
      $region58: #{tpu_custom_call.1} parent=5 // pred_check_branch
        %698 = sbr.rel (%p696) target = $region60
      $region59: #{tpu_custom_call.1} parent=5 // pred_region
        %s699 = ssub.s32 %s18, 2
        // Predicated region
        $region61: #{tpu_custom_call.1} parent=59 // pred_check
          %p700 = pneg %p157
        $region62: #{tpu_custom_call.1} parent=59 // pred_check_branch
          %702 = sbr.rel (%p700) target = $region64
        $region63: #{tpu_custom_call.1} parent=59 // pred_region
          %s703 = sand.u32 %s142, 1
          %s704 = scalar_lea.sflag [#allocation4], %s703
          %s705 = sand.u32 %s142, 1
          %s706 = smul.addr %s705, 8
          %s707 = scalar_lea.vmem [#allocation8], %s706
          %709 = dma.done %s704, 128
        $region64: #{tpu_custom_call.1} parent=59 // pred_fallthru
          _
      $region60: #{tpu_custom_call.1} parent=5 // pred_fallthru
        _
    $region6: #{tpu_custom_call.1} parent=1 // loop_footer
      %s22 = sadd.s32 1, %s18
    $region7: #{tpu_custom_call.1} parent=1 // loop_footer_branch
      %17 = sbr.rel target = $region3
    $region8: #{tpu_custom_call.1} parent=1 // loop_exit
      _
    %710 = vsyncpa [#allocation3], 1
    %s711 = scalar_lea.sflag [#allocation3], 1
    %712 = vsyncpa %s711, 1
    %713 = vsyncpa [#allocation6], 1
    %714 = vsyncpa [#allocation4], 1
    %s715 = scalar_lea.sflag [#allocation4], 1
    %716 = vsyncpa %s715, 1

</llo_original>
